<compile_context>
chip_gen: v7x
topology: tpu7x:2x2x1
jax: 0.10.0
libtpu: 0.0.40
codegen_flags: <defaults>
</compile_context>

<pallas_src>
import functools

import jax
import jax.numpy as jnp
from jax.experimental import pallas as pl
from jax.experimental.pallas import tpu as pltpu


def _group_chan_norm_kernel(x_ref, w_ref, b_ref, o_ref, *, eps):
    # x_ref: (G, cg, tile_t)  — groups x channels-in-group on sublanes, time on lanes.
    # w_ref, b_ref: (G, cg, 1) float32 affine params, broadcast along the lane (T) axis.
    x = x_ref[...].astype(jnp.float32)                      # (G, cg, Tt)

    mean = jnp.mean(x, axis=1, keepdims=True)               # (G, 1, Tt)  sublane reduce
    d = x - mean
    var = jnp.mean(d * d, axis=1, keepdims=True)            # biased var (torch GroupNorm)
    inv = jax.lax.rsqrt(var + eps)                          # (G, 1, Tt)

    y = (d * inv) * w_ref[...] + b_ref[...]                 # normalize + affine
    o_ref[...] = y.astype(o_ref.dtype)


def _choose_tile_t(C, T, itemsize):
    """Largest lane-dense T tile whose pipeline buffers stay well inside VMEM.

    Budget ~4 MiB of input per grid step => (in + out) double-buffered ~16 MiB plus
    f32 intermediates, comfortably under a 48 MiB scoped limit on every generation
    (v7x physical VMEM is only 64 MiB; v5e/v6e have 128 MiB of headroom).
    """
    budget_per_block = 4 * 1024 * 1024
    max_tile = budget_per_block // max(1, C * itemsize)
    if T <= max_tile:
        return T                                  # full T: always a legal block dim
    return max(128, (max_tile // 128) * 128)      # lane-dense multiple of 128


def group_chan_norm(x, weight, bias, num_groups, eps=1e-5, tile_t=None):
    """x: (B, C, T) -> (B, C, T), matching GroupChanNorm.forward semantics."""
    B, C, T = x.shape
    assert C % num_groups == 0
    G = num_groups
    cg = C // G

    if tile_t is None:
        tile_t = _choose_tile_t(C, T, jnp.dtype(x.dtype).itemsize)

    # Free (view-only) reshapes: split the channel axis into (groups, chans-per-group).
    xg = x.reshape(B, G, cg, T)
    w = weight.astype(jnp.float32).reshape(G, cg, 1)   # stays f32 (torch GN semantics)
    b = bias.astype(jnp.float32).reshape(G, cg, 1)

    grid = (B, pl.cdiv(T, tile_t))                     # ragged last T tile is fine:
                                                       # per-lane compute, masked writeback
    kernel = functools.partial(_group_chan_norm_kernel, eps=eps)
    out = pl.pallas_call(
        kernel,
        out_shape=jax.ShapeDtypeStruct((B, G, cg, T), x.dtype),
        grid=grid,
        in_specs=[
            pl.BlockSpec((None, G, cg, tile_t), lambda bi, ti: (bi, 0, 0, ti)),
            pl.BlockSpec((G, cg, 1), lambda bi, ti: (0, 0, 0)),
            pl.BlockSpec((G, cg, 1), lambda bi, ti: (0, 0, 0)),
        ],
        out_specs=pl.BlockSpec((None, G, cg, tile_t), lambda bi, ti: (bi, 0, 0, ti)),
        compiler_params=pltpu.CompilerParams(
            dimension_semantics=("parallel", "parallel"),
            vmem_limit_bytes=48 * 1024 * 1024,
        ),
    )(xg, w, b)

    return out.reshape(B, C, T)                        # free dim-merge view


def _ref_group_chan_norm(x, weight, bias, num_groups, eps=1e-5):
    # Pure-JAX reference mirroring nn.GroupNorm on the (B*T, C) view (torch semantics).
    B, C, T = x.shape
    xt = jnp.transpose(x, (0, 2, 1)).reshape(B * T, C).astype(jnp.float32)
    xg = xt.reshape(B * T, num_groups, C // num_groups)
    mean = xg.mean(-1, keepdims=True)
    var = ((xg - mean) ** 2).mean(-1, keepdims=True)
    y = ((xg - mean) / jnp.sqrt(var + eps)).reshape(B * T, C)
    y = y * weight.astype(jnp.float32) + bias.astype(jnp.float32)
    return jnp.transpose(y.reshape(B, T, C), (0, 2, 1)).astype(x.dtype)


if __name__ == "__main__":
    def run_case(B, C, T, G, tile_t=None):
        key = jax.random.PRNGKey(0)
        kx, kw, kb = jax.random.split(key, 3)
        x = jax.random.normal(kx, (B, C, T), dtype=jnp.float32)
        # nn.GroupNorm default affine is ones/zeros; perturb deterministically to
        # exercise the affine path.
        weight = jnp.ones((C,), jnp.float32) + 0.1 * jax.random.normal(kw, (C,), jnp.float32)
        bias = 0.1 * jax.random.normal(kb, (C,), jnp.float32)

        out = group_chan_norm(x, weight, bias, G, tile_t=tile_t)
        out = jax.block_until_ready(out)

        ref = _ref_group_chan_norm(x, weight, bias, G)
        assert out.shape == (B, C, T)
        assert jnp.allclose(out, ref, atol=1e-5, rtol=1e-5), (
            f"mismatch vs reference (B={B}, C={C}, T={T}, G={G}, tile_t={tile_t})"
        )

    # Module-sized case (single full-T tile).
    run_case(2, 4, 16, 2)
    # Multi-tile + ragged last T tile (exercises the cdiv grid / masked writeback path).
    run_case(2, 8, 320, 4, tile_t=128)

    print("KERNEL_OK")
</pallas_src>

<mosaic_0001>
module attributes {stable_mosaic.version = 11 : i64} {
  func.func @_group_chan_norm_kernel(%arg0: i32, %arg1: i32, %arg2: memref<1x2x2x16xf32, #tpu.memory_space<vmem>>, %arg3: memref<2x2x1xf32, #tpu.memory_space<vmem>>, %arg4: memref<2x2x1xf32, #tpu.memory_space<vmem>>, %arg5: memref<1x2x2x16xf32, #tpu.memory_space<vmem>>) attributes {dimension_semantics = [#tpu.dimension_semantics<parallel>, #tpu.dimension_semantics<parallel>], iteration_bounds = array<i64: 2, 1>, scalar_prefetch = 0 : i64, scratch_operands = 0 : i64, tpu.core_type = #tpu.core_type<tc>, window_params = [{transform_indices = @transform_0, window_bounds = array<i64: 1, 2, 2, 16>}, {pipeline_mode = #tpu.pipeline_mode<synchronous>, transform_indices = @transform_1, window_bounds = array<i64: 2, 2, 1>}, {pipeline_mode = #tpu.pipeline_mode<synchronous>, transform_indices = @transform_2, window_bounds = array<i64: 2, 2, 1>}, {transform_indices = @transform_3, window_bounds = array<i64: 1, 2, 2, 16>}]} {
    %c0 = arith.constant 0 : index
    %c0_0 = arith.constant 0 : index
    %c0_1 = arith.constant 0 : index
    %c0_2 = arith.constant 0 : index
    %0 = vector.load %arg2[%c0, %c0_0, %c0_1, %c0_2] : memref<1x2x2x16xf32, #tpu.memory_space<vmem>>, vector<1x2x2x16xf32>
    %1 = vector.shape_cast %0 : vector<1x2x2x16xf32> to vector<2x2x16xf32>
    %cst = arith.constant dense<0.000000e+00> : vector<2x16xf32>
    %2 = vector.multi_reduction <add>, %1, %cst [1] : vector<2x2x16xf32> to vector<2x16xf32>
    %3 = vector.shape_cast %2 : vector<2x16xf32> to vector<2x1x16xf32>
    %cst_3 = arith.constant 2.000000e+00 : f32
    %4 = vector.broadcast %cst_3 : f32 to vector<2x1x16xf32>
    %5 = arith.divf %3, %4 : vector<2x1x16xf32>
    %6 = vector.broadcast %5 : vector<2x1x16xf32> to vector<2x2x16xf32>
    %7 = arith.subf %1, %6 : vector<2x2x16xf32>
    %8 = arith.mulf %7, %7 : vector<2x2x16xf32>
    %cst_4 = arith.constant dense<0.000000e+00> : vector<2x16xf32>
    %9 = vector.multi_reduction <add>, %8, %cst_4 [1] : vector<2x2x16xf32> to vector<2x16xf32>
    %10 = vector.shape_cast %9 : vector<2x16xf32> to vector<2x1x16xf32>
    %cst_5 = arith.constant 2.000000e+00 : f32
    %11 = vector.broadcast %cst_5 : f32 to vector<2x1x16xf32>
    %12 = arith.divf %10, %11 : vector<2x1x16xf32>
    %cst_6 = arith.constant 9.99999974E-6 : f32
    %13 = vector.broadcast %cst_6 : f32 to vector<2x1x16xf32>
    %14 = arith.addf %12, %13 : vector<2x1x16xf32>
    %15 = math.rsqrt %14 : vector<2x1x16xf32>
    %16 = vector.broadcast %15 : vector<2x1x16xf32> to vector<2x2x16xf32>
    %17 = arith.mulf %7, %16 : vector<2x2x16xf32>
    %c0_7 = arith.constant 0 : index
    %c0_8 = arith.constant 0 : index
    %c0_9 = arith.constant 0 : index
    %18 = vector.load %arg3[%c0_7, %c0_8, %c0_9] : memref<2x2x1xf32, #tpu.memory_space<vmem>>, vector<2x2x1xf32>
    %19 = vector.broadcast %18 : vector<2x2x1xf32> to vector<2x2x16xf32>
    %20 = arith.mulf %17, %19 : vector<2x2x16xf32>
    %c0_10 = arith.constant 0 : index
    %c0_11 = arith.constant 0 : index
    %c0_12 = arith.constant 0 : index
    %21 = vector.load %arg4[%c0_10, %c0_11, %c0_12] : memref<2x2x1xf32, #tpu.memory_space<vmem>>, vector<2x2x1xf32>
    %22 = vector.broadcast %21 : vector<2x2x1xf32> to vector<2x2x16xf32>
    %23 = arith.addf %20, %22 : vector<2x2x16xf32>
    %c0_13 = arith.constant 0 : index
    %c0_14 = arith.constant 0 : index
    %c0_15 = arith.constant 0 : index
    %c0_16 = arith.constant 0 : index
    %24 = vector.load %arg5[%c0_13, %c0_14, %c0_15, %c0_16] : memref<1x2x2x16xf32, #tpu.memory_space<vmem>>, vector<1x2x2x16xf32>
    %25 = vector.shape_cast %24 : vector<1x2x2x16xf32> to vector<2x2x16xf32>
    %26 = vector.shape_cast %23 : vector<2x2x16xf32> to vector<1x2x2x16xf32>
    tpu.vector_store %arg5[%c0_13, %c0_14, %c0_15, %c0_16], %26 {strides = array<i32>} : memref<1x2x2x16xf32, #tpu.memory_space<vmem>>, vector<1x2x2x16xf32>,
    return
  }
  func.func @transform_0(%arg0: i32, %arg1: i32) -> (i32, i32, i32, i32) {
    %c0_i32 = arith.constant 0 : i32
    %c0_i32_0 = arith.constant 0 : i32
    %c0_i32_1 = arith.constant 0 : i32
    return %arg0, %c0_i32, %c0_i32_0, %arg1 : i32, i32, i32, i32
  }
  func.func @transform_1(%arg0: i32, %arg1: i32) -> (i32, i32, i32) {
    %c0_i32 = arith.constant 0 : i32
    %c0_i32_0 = arith.constant 0 : i32
    %c0_i32_1 = arith.constant 0 : i32
    %c0_i32_2 = arith.constant 0 : i32
    return %c0_i32, %c0_i32_0, %c0_i32_1 : i32, i32, i32
  }
  func.func @transform_2(%arg0: i32, %arg1: i32) -> (i32, i32, i32) {
    %c0_i32 = arith.constant 0 : i32
    %c0_i32_0 = arith.constant 0 : i32
    %c0_i32_1 = arith.constant 0 : i32
    %c0_i32_2 = arith.constant 0 : i32
    return %c0_i32, %c0_i32_0, %c0_i32_1 : i32, i32, i32
  }
  func.func @transform_3(%arg0: i32, %arg1: i32) -> (i32, i32, i32, i32) {
    %c0_i32 = arith.constant 0 : i32
    %c0_i32_0 = arith.constant 0 : i32
    %c0_i32_1 = arith.constant 0 : i32
    return %arg0, %c0_i32, %c0_i32_0, %arg1 : i32, i32, i32, i32
  }
}

</mosaic_0001>

<llo_original>
// kernel: tpu_custom_call.1
$region0: #{tpu_custom_call.1}
  #allocation0 [shape = 'u32[]', space=smem, size = 0x4, offset = 0x4, fixed_abs, tag = 'smem constant byte address 0x4 - core index']
  #allocation1 [shape = 'u32[144,128]{1,0:T(1,128)}', space=vmem, size = 0x12000, scoped, tag = 'internal scratch']
  %s0 = inlined_call_operand.vmem [shape: f32[2,2,2,16], index: 0, kind: input, shape index: {}]
  %s1 = inlined_call_operand.vmem [shape: f32[2,2,1], index: 1, kind: input, shape index: {}]
  %s2 = inlined_call_operand.vmem [shape: f32[2,2,1], index: 2, kind: input, shape index: {}]
  %s3 = inlined_call_operand.hbm [shape: f32[2,2,2,16], index: 3, kind: output, shape index: {}]
  %s4 = sld [smem:[#allocation0]]
  $region45: #{tpu_custom_call.1} parent=0
    _
  %s6 = ssub.s32 1, %s4
  %s7 = scalar_select 0, %s6, %s4
  $region1: #{tpu_custom_call.1} parent=0
    #allocation2 [shape = 'u8[4096]{0}', space=vmem, size = 0x1000, scoped, tag = 'output window, operand 0']
    #allocation3 [shape = 's32[2]{0}', space=sflag, size = 0x8, scoped, tag = 'scoped memory for tpu_custom_call.1']
    %8 = vsyncpa [#allocation3], 0
    %s9 = scalar_lea.sflag [#allocation3], 1
    %10 = vsyncpa %s9, 0
    loop: start=0, step=1, limit=4
    $region2: #{tpu_custom_call.1} parent=1 // loop_pre_header
      _
    $region3: #{tpu_custom_call.1} parent=1 // loop_header
      %s12 = sphi 0, %s16
      %p13 = scmp.ge.s32.totalorder %s12, 4
      %s19 = sphi 0, %s31
      %s20 = sphi 0, %s27
      %s21 = sphi 0, %s19
      %s22 = sphi 0, %s20
      %s23 = sphi 0, %s21
      %s24 = sphi 0, %s22
      %s36 = sphi 0, %s38
      %s39 = sphi 0, %s36
      %s40 = sphi 0, %s39
      %s56 = sphi 0, %s40
      %s60 = sphi 0, %s60
      %s62 = sphi 0, %s60
      %s63 = sphi 0, %s62
      %s77 = sphi 0, %s63
      %s81 = sphi 0, %s81
      %s83 = sphi 0, %s81
      %s84 = sphi 0, %s83
      %s98 = sphi 0, %s84
      %s106 = sphi 0, %s108
      %s109 = sphi 0, %s106
      %s110 = sphi 0, %s109
      %s126 = sphi 0, %s110
    $region4: #{tpu_custom_call.1} parent=1 // loop_header_branch
      %15 = sbr.rel (%p13) target = $region8
    $region5: #{tpu_custom_call.1} parent=1 // loop_body
      %s17 = ssub.s32 %s12, 1
      %s18 = ssub.s32 %s12, 2
      %s25 = sadd.s32 1, %s20
      %p26 = scmp.ge.s32.totalorder %s25, 1
      %s27 = scalar_select %p26, 0, %s25
      %s28 = sadd.s32 1, %s19
      %s29 = scalar_select %p26, %s28, %s19
      %p30 = scmp.ge.s32.totalorder %s29, 2
      %s31 = scalar_select %p30, 0, %s29
      %s32 = ssub.s32 %s19, %s31
      %s33 = ssub.s32 %s20, %s27
      %s34 = sor.u32 %s32, %s33
      %p35 = scmp.eq.s32.totalorder %s34, 0
      %s37 = sadd.s32 %s36, 1
      %s38 = scalar_select %p35, %s36, %s37
      %p41 = pneg %p35
      %p42 = scmp.eq.s32.totalorder %s12, 1
      %p43 = por %p41, %p42
      %p44 = scmp.ne.s32.totalorder %s36, %s39
      %p45 = scmp.eq.s32.totalorder %s12, 0
      %p46 = por %p44, %p45
      %p47 = scmp.ne.s32.totalorder %s36, %s39
      %p48 = scmp.eq.s32.totalorder %s17, 1
      %p49 = por %p47, %p48
      %p50 = scmp.ne.s32.totalorder %s39, %s40
      %p51 = scmp.eq.s32.totalorder %s17, 0
      %p52 = por %p50, %p51
      %p53 = scmp.ne.s32.totalorder %s39, %s40
      %p54 = scmp.eq.s32.totalorder %s18, 1
      %p55 = por %p53, %p54
      %p57 = scmp.ne.s32.totalorder %s40, %s56
      %p58 = scmp.eq.s32.totalorder %s18, 0
      %p59 = por %p57, %p58
      %s61 = sadd.s32 %s60, 1
      %p64 = scmp.eq.s32.totalorder %s12, 1
      %p65 = scmp.ne.s32.totalorder %s60, %s62
      %p66 = scmp.eq.s32.totalorder %s12, 0
      %p67 = por %p65, %p66
      %p68 = scmp.ne.s32.totalorder %s60, %s62
      %p69 = scmp.eq.s32.totalorder %s17, 1
      %p70 = por %p68, %p69
      %p71 = scmp.ne.s32.totalorder %s62, %s63
      %p72 = scmp.eq.s32.totalorder %s17, 0
      %p73 = por %p71, %p72
      %p74 = scmp.ne.s32.totalorder %s62, %s63
      %p75 = scmp.eq.s32.totalorder %s18, 1
      %p76 = por %p74, %p75
      %p78 = scmp.ne.s32.totalorder %s63, %s77
      %p79 = scmp.eq.s32.totalorder %s18, 0
      %p80 = por %p78, %p79
      %s82 = sadd.s32 %s81, 1
      %p85 = scmp.eq.s32.totalorder %s12, 1
      %p86 = scmp.ne.s32.totalorder %s81, %s83
      %p87 = scmp.eq.s32.totalorder %s12, 0
      %p88 = por %p86, %p87
      %p89 = scmp.ne.s32.totalorder %s81, %s83
      %p90 = scmp.eq.s32.totalorder %s17, 1
      %p91 = por %p89, %p90
      %p92 = scmp.ne.s32.totalorder %s83, %s84
      %p93 = scmp.eq.s32.totalorder %s17, 0
      %p94 = por %p92, %p93
      %p95 = scmp.ne.s32.totalorder %s83, %s84
      %p96 = scmp.eq.s32.totalorder %s18, 1
      %p97 = por %p95, %p96
      %p99 = scmp.ne.s32.totalorder %s84, %s98
      %p100 = scmp.eq.s32.totalorder %s18, 0
      %p101 = por %p99, %p100
      %s102 = ssub.s32 %s19, %s31
      %s103 = ssub.s32 %s20, %s27
      %s104 = sor.u32 %s102, %s103
      %p105 = scmp.eq.s32.totalorder %s104, 0
      %s107 = sadd.s32 %s106, 1
      %s108 = scalar_select %p105, %s106, %s107
      %p111 = pneg %p105
      %p112 = scmp.eq.s32.totalorder %s12, 1
      %p113 = por %p111, %p112
      %p114 = scmp.ne.s32.totalorder %s106, %s109
      %p115 = scmp.eq.s32.totalorder %s12, 0
      %p116 = por %p114, %p115
      %p117 = scmp.ne.s32.totalorder %s106, %s109
      %p118 = scmp.eq.s32.totalorder %s17, 1
      %p119 = por %p117, %p118
      %p120 = scmp.ne.s32.totalorder %s109, %s110
      %p121 = scmp.eq.s32.totalorder %s17, 0
      %p122 = por %p120, %p121
      %p123 = scmp.ne.s32.totalorder %s109, %s110
      %p124 = scmp.eq.s32.totalorder %s18, 1
      %p125 = por %p123, %p124
      %p127 = scmp.ne.s32.totalorder %s110, %s126
      %p128 = scmp.eq.s32.totalorder %s18, 0
      %p129 = por %p127, %p128
      %p130 = scmp.le.s32.totalorder 1, %s12
      %p131 = scmp.lt.s32.totalorder %s12, 3
      %p132 = pnand %p130, %p131
      %p133 = pneg %p132
      // Predicated region
      $region9: #{tpu_custom_call.1} parent=5 // pred_check
        _
      $region10: #{tpu_custom_call.1} parent=5 // pred_check_branch
        %135 = sbr.rel (%p132) target = $region12
      $region11: #{tpu_custom_call.1} parent=5 // pred_region
        %s136 = ssub.s32 %s12, 1
        // Predicated region
        $region13: #{tpu_custom_call.1} parent=11 // pred_check
          %p137 = pneg %p73
        $region14: #{tpu_custom_call.1} parent=11 // pred_check_branch
          %139 = sbr.rel (%p137) target = $region16
        $region15: #{tpu_custom_call.1} parent=11 // pred_region
          _
        $region16: #{tpu_custom_call.1} parent=11 // pred_fallthru
          _
        // Predicated region
        $region17: #{tpu_custom_call.1} parent=11 // pred_check
          %p140 = pneg %p94
        $region18: #{tpu_custom_call.1} parent=11 // pred_check_branch
          %142 = sbr.rel (%p140) target = $region20
        $region19: #{tpu_custom_call.1} parent=11 // pred_region
          _
        $region20: #{tpu_custom_call.1} parent=11 // pred_fallthru
          _
      $region12: #{tpu_custom_call.1} parent=5 // pred_fallthru
        _
      %p143 = scmp.lt.s32.totalorder %s12, 2
      // Predicated region
      $region21: #{tpu_custom_call.1} parent=5 // pred_check
        %p144 = pneg %p143
      $region22: #{tpu_custom_call.1} parent=5 // pred_check_branch
        %146 = sbr.rel (%p144) target = $region24
      $region23: #{tpu_custom_call.1} parent=5 // pred_region
        // Predicated region
        $region25: #{tpu_custom_call.1} parent=23 // pred_check
          %p147 = pneg %p46
        $region26: #{tpu_custom_call.1} parent=23 // pred_check_branch
          %149 = sbr.rel (%p147) target = $region28
        $region27: #{tpu_custom_call.1} parent=23 // pred_region
          %p150 = scmp.lt.s32.totalorder %s19, 1
          %s151 = scalar_select %p150, %s19, 1
          %p152 = scmp.lt.s32.totalorder %s20, 0
          %s153 = scalar_select %p152, %s20, 0
          %s154 = smul.addr %s151, 2
          %s155 = sadd.s32 %s153, %s154
          %s156 = smul.addr %s155, 2
          %s157 = scalar_lea.vmem %s0, %s156
        $region28: #{tpu_custom_call.1} parent=23 // pred_fallthru
          _
      $region24: #{tpu_custom_call.1} parent=5 // pred_fallthru
        _
      %p158 = scmp.le.s32.totalorder 1, %s12
      %p159 = scmp.lt.s32.totalorder %s12, 3
      %p160 = pnand %p158, %p159
      %p161 = pneg %p160
      // Predicated region
      $region29: #{tpu_custom_call.1} parent=5 // pred_check
        _
      $region30: #{tpu_custom_call.1} parent=5 // pred_check_branch
        %163 = sbr.rel (%p160) target = $region32
      $region31: #{tpu_custom_call.1} parent=5 // pred_region
        %s164 = ssub.s32 %s12, 1
        %p165 = scmp.lt.s32.totalorder %s21, 1
        %s166 = scalar_select %p165, %s21, 1
        %p167 = scmp.lt.s32.totalorder %s22, 0
        %s168 = scalar_select %p167, %s22, 0
        %s169 = smul.addr %s166, 2
        %s170 = sadd.s32 %s168, %s169
        %s171 = smul.addr %s170, 2
        %s172 = scalar_lea.vmem %s0, %s171
        %p173 = pneg %p52
        %p174 = pneg %p49
        %p175 = pneg %p73
        %p176 = pneg %p70
        %p177 = pneg %p94
        %p178 = pneg %p91
        %p179 = pneg %p122
        %p180 = pneg %p119
        %s181 = sand.u32 %s109, 1
        %s182 = scalar_lea.sflag [#allocation3], %s181
        %s183 = sand.u32 %s109, 1
        %s184 = smul.addr %s183, 4
        %s185 = scalar_lea.vmem [#allocation2], %s184
        %p186 = scmp.lt.s32.totalorder %s21, 1
        %s187 = scalar_select %p186, %s21, 1
        %p188 = scmp.lt.s32.totalorder %s22, 0
        %s189 = scalar_select %p188, %s22, 0
        %s190 = smul.addr %s187, 2
        %s191 = sadd.s32 %s189, %s190
        %s192 = smul.addr %s191, 2
        %s193 = scalar_lea.vmem %s0, %s192
        %v194 = vld [vmem:[%s193] sm:$0x3]
        %v195 = vld [vmem:[%s193 + $0x2] sm:$0x3]
        %vm196 = vcmask 123904
        %v197 = vsel %vm196, %v194, 0.0
        %v198 = vrot.slane %v197, 4
        %v199 = vadd.f32 %v197, %v198
        %v200 = vrot.slane %v199, 2
        %v201 = vadd.f32 %v199, %v200
        %v202 = vrot.slane %v201, 1
        %v203 = vadd.f32 %v201, %v202
        %v204 = vsel %vm196, %v195, 0.0
        %v205 = vrot.slane %v204, 4
        %v206 = vadd.f32 %v204, %v205
        %v207 = vrot.slane %v206, 2
        %v208 = vadd.f32 %v206, %v207
        %v209 = vrot.slane %v208, 1
        %v210 = vadd.f32 %v208, %v209
        %v211 = vrcp.pop 2.0
        %v212 = vmul.f32 %v203, %v211
        %v213 = vmul.f32 %v210, %v211
        %v214 = vsub.f32 %v194, %v212
        %v215 = vsub.f32 %v195, %v213
        %v216 = vmul.f32 %v214, %v214
        %v217 = vmul.f32 %v215, %v215
        %v218 = vsel %vm196, %v216, 0.0
        %v219 = vrot.slane %v218, 4
        %v220 = vadd.f32 %v218, %v219
        %v221 = vrot.slane %v220, 2
        %v222 = vadd.f32 %v220, %v221
        %v223 = vrot.slane %v222, 1
        %v224 = vadd.f32 %v222, %v223
        %v225 = vsel %vm196, %v217, 0.0
        %v226 = vrot.slane %v225, 4
        %v227 = vadd.f32 %v225, %v226
        %v228 = vrot.slane %v227, 2
        %v229 = vadd.f32 %v227, %v228
        %v230 = vrot.slane %v229, 1
        %v231 = vadd.f32 %v229, %v230
        %v232 = vmul.f32 %v224, %v211
        %v233 = vmul.f32 %v231, %v211
        %v234 = vadd.f32 %v232, 1e-05
        %v235 = vadd.f32 %v233, 1e-05
        %v236 = vrsqrt.pop %v234
        %v237 = vrsqrt.pop %v235
        %v238 = vmul.f32 %v214, %v236
        %v239 = vmul.f32 %v215, %v237
        %v240 = vld [vmem:[%s1] sm:$0x3]
        %v241 = vld [vmem:[%s1 + $0x2] sm:$0x3]
        %243 = vset.pattern.permute.xlu0 0
        %244 = vperm.xlu0 %243, %v240
        %v245 = vpop.permute.xlu0 %244
        %248 = vset.pattern.permute.xlu0 0
        %249 = vperm.xlu0 %248, %v241
        %v250 = vpop.permute.xlu0 %249
        %v252 = vmul.f32 %v238, %v245
        %v253 = vmul.f32 %v239, %v250
        %v254 = vld [vmem:[%s2] sm:$0x3]
        %v255 = vld [vmem:[%s2 + $0x2] sm:$0x3]
        %257 = vset.pattern.permute.xlu0 0
        %258 = vperm.xlu0 %257, %v254
        %v259 = vpop.permute.xlu0 %258
        %262 = vset.pattern.permute.xlu0 0
        %263 = vperm.xlu0 %262, %v255
        %v264 = vpop.permute.xlu0 %263
        %v266 = vadd.f32 %v252, %v259
        %v267 = vadd.f32 %v253, %v264
        %268 = vst.msk [vmem:[%s185] sm:$0x3] %vm196, %v266
        %269 = vst.msk [vmem:[%s185 + $0x2] sm:$0x3] %vm196, %v267
        %s270 = sand.u32 %s109, 1
        %s271 = scalar_lea.sflag [#allocation3], %s270
        %s272 = sand.u32 %s109, 1
        %s273 = smul.addr %s272, 4
        %s274 = scalar_lea.vmem [#allocation2], %s273
        // Predicated region
        $region33: #{tpu_custom_call.1} parent=31 // pred_check
          %p275 = pneg %p119
        $region34: #{tpu_custom_call.1} parent=31 // pred_check_branch
          %277 = sbr.rel (%p275) target = $region36
        $region35: #{tpu_custom_call.1} parent=31 // pred_region
          %s279 = ssub.s32 64, 64
          %280 = vsyncadd %s271, %s279
          %s281 = smul.addr %s21, 2
          %s282 = sadd.s32 %s22, %s281
          %s283 = smul.addr %s282, 32
          %s284 = scalar_lea.hbm %s3, %s283
          %s285 = sshll.u32 %s274, 4
          %s286 = int_to_ptr.vmem [resolvable:$true] %s285
          %291 = dma.vmem_to_hbm [thread:$0]  %s286, 64, %s284, %s271, 32, 32, 2
        $region36: #{tpu_custom_call.1} parent=31 // pred_fallthru
          _
      $region32: #{tpu_custom_call.1} parent=5 // pred_fallthru
        _
      %p292 = scmp.le.s32.totalorder 2, %s12
      // Predicated region
      $region37: #{tpu_custom_call.1} parent=5 // pred_check
        %p293 = pneg %p292
      $region38: #{tpu_custom_call.1} parent=5 // pred_check_branch
        %295 = sbr.rel (%p293) target = $region40
      $region39: #{tpu_custom_call.1} parent=5 // pred_region
        %s296 = ssub.s32 %s12, 2
        // Predicated region
        $region41: #{tpu_custom_call.1} parent=39 // pred_check
          %p297 = pneg %p125
        $region42: #{tpu_custom_call.1} parent=39 // pred_check_branch
          %299 = sbr.rel (%p297) target = $region44
        $region43: #{tpu_custom_call.1} parent=39 // pred_region
          %s300 = sand.u32 %s110, 1
          %s301 = scalar_lea.sflag [#allocation3], %s300
          %s302 = sand.u32 %s110, 1
          %s303 = smul.addr %s302, 4
          %s304 = scalar_lea.vmem [#allocation2], %s303
          %305 = dma.done %s301, 64
        $region44: #{tpu_custom_call.1} parent=39 // pred_fallthru
          _
      $region40: #{tpu_custom_call.1} parent=5 // pred_fallthru
        _
    $region6: #{tpu_custom_call.1} parent=1 // loop_footer
      %s16 = sadd.s32 1, %s12
    $region7: #{tpu_custom_call.1} parent=1 // loop_footer_branch
      %11 = sbr.rel target = $region3
    $region8: #{tpu_custom_call.1} parent=1 // loop_exit
      _
    %306 = vsyncpa [#allocation3], 1
    %s307 = scalar_lea.sflag [#allocation3], 1
    %308 = vsyncpa %s307, 1

</llo_original>
